<compile_context>
chip_gen: v7x
topology: tpu7x:2x2x1
jax: 0.10.0
libtpu: 0.0.40
codegen_flags: <defaults>
</compile_context>

<pallas_src>
import math
import functools

import jax
import jax.numpy as jnp
from jax.experimental import pallas as pl
from jax.experimental.pallas import tpu as pltpu


def _mha_kernel(x_ref, wqkv_ref, bqkv_ref, wo_ref, bo_ref, slab_ref,
                *, batch_block, seq, n_heads, d_k):
    """One grid step: fused QKV proj + per-head batched attention + out proj.

    x_ref:    (bb*S, D)  bf16
    wqkv_ref: (D, 3D)    bf16   (resident across grid steps)
    bqkv_ref: (1, 3D)    f32
    wo_ref:   (D, D)     bf16
    bo_ref:   (1, D)     f32
    slab_ref: (bb*S, 4D) f32    packed output [out | q | k | v]
    """
    d_model = n_heads * d_k
    x = x_ref[...]                                                   # (bb*S, D) bf16

    # --- fused QKV projection: one bf16 MXU matmul, f32 accumulation ---
    qkv = jnp.dot(x, wqkv_ref[...],
                  preferred_element_type=jnp.float32) + bqkv_ref[...]  # (bb*S, 3D) f32

    q = qkv[:, :d_model]
    k = qkv[:, d_model:2 * d_model]
    v = qkv[:, 2 * d_model:]

    # Fold 1/sqrt(d_k) into q once (side output `q` in the slab stays unscaled).
    scale = 1.0 / math.sqrt(d_k)
    q3 = (q * scale).astype(jnp.bfloat16).reshape(batch_block, seq, d_model)
    k3 = k.astype(jnp.bfloat16).reshape(batch_block, seq, d_model)
    v3 = v.astype(jnp.bfloat16).reshape(batch_block, seq, d_model)

    # TODO(synk): for long sequences add online-softmax KV tiling so the (S, S)
    # f32 scores block is never materialized (first wall on v7x's 64 MiB VMEM).
    head_outs = []
    for h in range(n_heads):                     # static unroll over heads (small H)
        c0 = h * d_k
        qh = q3[:, :, c0:c0 + d_k]               # (bb, S, d_k) bf16
        kh = k3[:, :, c0:c0 + d_k]
        vh = v3[:, :, c0:c0 + d_k]

        # scores = q @ k^T, batched over the block's batch dim (no explicit k.T).
        scores = jnp.einsum('bqd,bkd->bqk', qh, kh,
                            preferred_element_type=jnp.float32)     # (bb, S, S) f32

        # softmax over last axis, f32 math, EUP reciprocal
        m = jnp.max(scores, axis=-1, keepdims=True)
        p = jnp.exp(scores - m)
        denom = jnp.sum(p, axis=-1, keepdims=True)
        p = p * pl.reciprocal(denom, approx=True)

        ah = jnp.einsum('bqk,bkd->bqd', p.astype(jnp.bfloat16), vh,
                        preferred_element_type=jnp.float32)         # (bb, S, d_k) f32
        head_outs.append(ah)

    # Assemble attention output in registers (no VMEM scratch) and project.
    attn = jnp.concatenate(head_outs, axis=-1).reshape(batch_block * seq, d_model)
    out = jnp.dot(attn.astype(jnp.bfloat16), wo_ref[...],
                  preferred_element_type=jnp.float32) + bo_ref[...]  # (bb*S, D) f32

    # Single lane-dense packed store: [out | q | k | v] -> (bb*S, 4*D) (128 lanes).
    slab_ref[...] = jnp.concatenate([out, qkv], axis=-1).astype(slab_ref.dtype)


def multi_head_attention(x, params, n_heads):
    """x: (B, S, D) f32.  params: PyTorch-layout (out, in) weights and (D,) biases.

    Returns (output, (q, k, v)) with q/k/v in (B, n_heads, S, d_k) layout,
    matching the PyTorch module's `transpose(1, 2)`.
    """
    B, S, D = x.shape
    assert D % n_heads == 0, "d_model must be divisible by n_heads"
    d_k = D // n_heads

    # Batches per grid block: aim for >=256 rows per block when shapes grow
    # (pipelining / HBM roofline), never more than B, and an exact divisor of B.
    bb = min(B, max(1, -(-256 // S)))
    while B % bb:
        bb -= 1
    n_blocks = B // bb
    rows = bb * S

    # bf16 inputs/weights for the MXU (accumulation stays f32 in-kernel).
    x_flat = x.reshape(B * S, D).astype(jnp.bfloat16)
    wqkv = jnp.concatenate(
        [params["wq"].T, params["wk"].T, params["wv"].T], axis=1).astype(jnp.bfloat16)
    bqkv = jnp.concatenate(
        [params["bq"], params["bk"], params["bv"]]).reshape(1, 3 * D).astype(jnp.float32)
    wo = params["wo"].T.astype(jnp.bfloat16)
    bo = params["bo"].reshape(1, D).astype(jnp.float32)

    kernel = functools.partial(_mha_kernel, batch_block=bb, seq=S,
                               n_heads=n_heads, d_k=d_k)

    slab = pl.pallas_call(
        kernel,
        out_shape=jax.ShapeDtypeStruct((B * S, 4 * D), jnp.float32),
        grid=(n_blocks,),
        in_specs=[
            pl.BlockSpec((rows, D), lambda i: (i, 0)),        # x, row-tiled
            pl.BlockSpec((D, 3 * D), lambda i: (0, 0)),       # fused Wqkv (resident)
            pl.BlockSpec((1, 3 * D), lambda i: (0, 0)),       # fused bias
            pl.BlockSpec((D, D), lambda i: (0, 0)),           # Wo (resident)
            pl.BlockSpec((1, D), lambda i: (0, 0)),           # bo
        ],
        out_specs=pl.BlockSpec((rows, 4 * D), lambda i: (i, 0)),
        compiler_params=pltpu.CompilerParams(
            dimension_semantics=("parallel",),
            vmem_limit_bytes=32 * 1024 * 1024),
    )(x_flat, wqkv, bqkv, wo, bo)

    out = slab[:, :D].reshape(B, S, D).astype(x.dtype)

    def split_heads(t):   # (B*S, D) -> (B, H, S, d_k), PyTorch transpose(1, 2) layout
        return t.reshape(B, S, n_heads, d_k).transpose(0, 2, 1, 3)

    q = split_heads(slab[:, D:2 * D])
    k = split_heads(slab[:, 2 * D:3 * D])
    v = split_heads(slab[:, 3 * D:])
    return out, (q, k, v)


def _reference(x, params, n_heads):
    """Pure-JAX f32 reference replicating the PyTorch forward exactly."""
    B, S, D = x.shape
    d_k = D // n_heads

    def lin(t, w, b):
        return t @ w.T + b

    q = lin(x, params["wq"], params["bq"]).reshape(B, S, n_heads, d_k).transpose(0, 2, 1, 3)
    k = lin(x, params["wk"], params["bk"]).reshape(B, S, n_heads, d_k).transpose(0, 2, 1, 3)
    v = lin(x, params["wv"], params["bv"]).reshape(B, S, n_heads, d_k).transpose(0, 2, 1, 3)
    scores = jnp.einsum("bhqd,bhkd->bhqk", q, k) / math.sqrt(d_k)
    attn = jax.nn.softmax(scores, axis=-1)
    ao = jnp.einsum("bhqk,bhkd->bhqd", attn, v)
    ao = ao.transpose(0, 2, 1, 3).reshape(B, S, D)
    out = lin(ao, params["wo"], params["bo"])
    return out, (q, k, v)


if __name__ == "__main__":
    B, S, D, H = 2, 8, 32, 4   # batch, seq, d_model, n_heads  (d_k = 8)

    key = jax.random.PRNGKey(0)
    ks = jax.random.split(key, 9)
    bound = 1.0 / math.sqrt(D)
    params = {
        "wq": jax.random.uniform(ks[0], (D, D), jnp.float32, -bound, bound),
        "bq": jax.random.uniform(ks[1], (D,),   jnp.float32, -bound, bound),
        "wk": jax.random.uniform(ks[2], (D, D), jnp.float32, -bound, bound),
        "bk": jax.random.uniform(ks[3], (D,),   jnp.float32, -bound, bound),
        "wv": jax.random.uniform(ks[4], (D, D), jnp.float32, -bound, bound),
        "bv": jax.random.uniform(ks[5], (D,),   jnp.float32, -bound, bound),
        "wo": jax.random.uniform(ks[6], (D, D), jnp.float32, -bound, bound),
        "bo": jax.random.uniform(ks[7], (D,),   jnp.float32, -bound, bound),
    }
    x = jax.random.normal(ks[8], (B, S, D), jnp.float32)

    out, (q, k, v) = multi_head_attention(x, params, H)
    jax.block_until_ready((out, q, k, v))

    ref_out, (ref_q, ref_k, ref_v) = _reference(x, params, H)
    # bf16 MXU path => relaxed tolerance vs the f32 reference.
    tol = dict(atol=3e-2, rtol=3e-2)
    assert jnp.allclose(out, ref_out, **tol)
    assert jnp.allclose(q, ref_q, **tol)
    assert jnp.allclose(k, ref_k, **tol)
    assert jnp.allclose(v, ref_v, **tol)

    print("KERNEL_OK")
</pallas_src>

<mosaic_0001>
module attributes {stable_mosaic.version = 11 : i64} {
  func.func @_mha_kernel(%arg0: i32, %arg1: memref<16x32xbf16, #tpu.memory_space<vmem>>, %arg2: memref<32x96xbf16, #tpu.memory_space<vmem>>, %arg3: memref<1x96xf32, #tpu.memory_space<vmem>>, %arg4: memref<32x32xbf16, #tpu.memory_space<vmem>>, %arg5: memref<1x32xf32, #tpu.memory_space<vmem>>, %arg6: memref<16x128xf32, #tpu.memory_space<vmem>>) attributes {dimension_semantics = [#tpu.dimension_semantics<parallel>], iteration_bounds = array<i64: 1>, scalar_prefetch = 0 : i64, scratch_operands = 0 : i64, tpu.core_type = #tpu.core_type<tc>, window_params = [{transform_indices = @transform_0, window_bounds = array<i64: 16, 32>}, {pipeline_mode = #tpu.pipeline_mode<synchronous>, transform_indices = @transform_1, window_bounds = array<i64: 32, 96>}, {pipeline_mode = #tpu.pipeline_mode<synchronous>, transform_indices = @transform_2, window_bounds = array<i64: 1, 96>}, {pipeline_mode = #tpu.pipeline_mode<synchronous>, transform_indices = @transform_3, window_bounds = array<i64: 32, 32>}, {pipeline_mode = #tpu.pipeline_mode<synchronous>, transform_indices = @transform_4, window_bounds = array<i64: 1, 32>}, {transform_indices = @transform_5, window_bounds = array<i64: 16, 128>}]} {
    %c0 = arith.constant 0 : index
    %c0_0 = arith.constant 0 : index
    %0 = vector.load %arg1[%c0, %c0_0] : memref<16x32xbf16, #tpu.memory_space<vmem>>, vector<16x32xbf16>
    %c0_1 = arith.constant 0 : index
    %c0_2 = arith.constant 0 : index
    %1 = vector.load %arg2[%c0_1, %c0_2] : memref<32x96xbf16, #tpu.memory_space<vmem>>, vector<32x96xbf16>
    %cst = arith.constant dense<0.000000e+00> : vector<16x96xf32>
    %2 = tpu.matmul %0, %1, %cst {dimension_numbers = #tpu.dot_dimension_numbers<[1], [0], [0], [1], [0, 0, 1, 1], [], []>} : vector<16x32xbf16>, vector<32x96xbf16>, vector<16x96xf32> -> vector<16x96xf32>
    %c0_3 = arith.constant 0 : index
    %c0_4 = arith.constant 0 : index
    %3 = vector.load %arg3[%c0_3, %c0_4] : memref<1x96xf32, #tpu.memory_space<vmem>>, vector<1x96xf32>
    %4 = vector.broadcast %3 : vector<1x96xf32> to vector<16x96xf32>
    %5 = arith.addf %2, %4 : vector<16x96xf32>
    %6 = vector.extract_strided_slice %5 {offsets = [0, 0], sizes = [16, 32], strides = [1, 1]} : vector<16x96xf32> to vector<16x32xf32>
    %7 = vector.extract_strided_slice %5 {offsets = [0, 32], sizes = [16, 32], strides = [1, 1]} : vector<16x96xf32> to vector<16x32xf32>
    %8 = vector.extract_strided_slice %5 {offsets = [0, 64], sizes = [16, 32], strides = [1, 1]} : vector<16x96xf32> to vector<16x32xf32>
    %cst_5 = arith.constant 0.353553385 : f32
    %9 = vector.broadcast %cst_5 : f32 to vector<16x32xf32>
    %10 = arith.mulf %6, %9 : vector<16x32xf32>
    %11 = arith.truncf %10 : vector<16x32xf32> to vector<16x32xbf16>
    %12 = vector.shape_cast %11 : vector<16x32xbf16> to vector<2x8x32xbf16>
    %13 = arith.truncf %7 : vector<16x32xf32> to vector<16x32xbf16>
    %14 = vector.shape_cast %13 : vector<16x32xbf16> to vector<2x8x32xbf16>
    %15 = arith.truncf %8 : vector<16x32xf32> to vector<16x32xbf16>
    %16 = vector.shape_cast %15 : vector<16x32xbf16> to vector<2x8x32xbf16>
    %17 = vector.extract_strided_slice %12 {offsets = [0, 0, 0], sizes = [2, 8, 8], strides = [1, 1, 1]} : vector<2x8x32xbf16> to vector<2x8x8xbf16>
    %18 = vector.extract_strided_slice %14 {offsets = [0, 0, 0], sizes = [2, 8, 8], strides = [1, 1, 1]} : vector<2x8x32xbf16> to vector<2x8x8xbf16>
    %19 = vector.extract_strided_slice %16 {offsets = [0, 0, 0], sizes = [2, 8, 8], strides = [1, 1, 1]} : vector<2x8x32xbf16> to vector<2x8x8xbf16>
    "tpu.trace_start"() <{level = 10 : i32, message = "bqd,bkd->bqk"}> : () -> ()
    %cst_6 = arith.constant dense<0.000000e+00> : vector<2x8x8xf32>
    %20 = tpu.matmul %17, %18, %cst_6 {dimension_numbers = #tpu.dot_dimension_numbers<[2], [2], [1], [1], [0, 0, 0, 1, 1, 1], [0], [0]>} : vector<2x8x8xbf16>, vector<2x8x8xbf16>, vector<2x8x8xf32> -> vector<2x8x8xf32>
    "tpu.trace_stop"() : () -> ()
    %cst_7 = arith.constant dense<0xFF800000> : vector<2x8xf32>
    %21 = vector.multi_reduction <maximumf>, %20, %cst_7 [2] : vector<2x8x8xf32> to vector<2x8xf32>
    %22 = vector.shape_cast %21 : vector<2x8xf32> to vector<2x8x1xf32>
    %23 = vector.broadcast %22 : vector<2x8x1xf32> to vector<2x8x8xf32>
    %24 = arith.subf %20, %23 : vector<2x8x8xf32>
    %25 = math.exp %24 : vector<2x8x8xf32>
    %cst_8 = arith.constant dense<0.000000e+00> : vector<2x8xf32>
    %26 = vector.multi_reduction <add>, %25, %cst_8 [2] : vector<2x8x8xf32> to vector<2x8xf32>
    %27 = vector.shape_cast %26 : vector<2x8xf32> to vector<2x8x1xf32>
    %28 = tpu.reciprocal %27 {approx = true} : vector<2x8x1xf32> -> vector<2x8x1xf32>
    %29 = vector.broadcast %28 : vector<2x8x1xf32> to vector<2x8x8xf32>
    %30 = arith.mulf %25, %29 : vector<2x8x8xf32>
    %31 = arith.truncf %30 : vector<2x8x8xf32> to vector<2x8x8xbf16>
    "tpu.trace_start"() <{level = 10 : i32, message = "bqk,bkd->bqd"}> : () -> ()
    %cst_9 = arith.constant dense<0.000000e+00> : vector<2x8x8xf32>
    %32 = tpu.matmul %31, %19, %cst_9 {dimension_numbers = #tpu.dot_dimension_numbers<[2], [1], [1], [2], [0, 0, 0, 1, 1, 2], [0], [0]>} : vector<2x8x8xbf16>, vector<2x8x8xbf16>, vector<2x8x8xf32> -> vector<2x8x8xf32>
    "tpu.trace_stop"() : () -> ()
    %33 = vector.extract_strided_slice %12 {offsets = [0, 0, 8], sizes = [2, 8, 8], strides = [1, 1, 1]} : vector<2x8x32xbf16> to vector<2x8x8xbf16>
    %34 = vector.extract_strided_slice %14 {offsets = [0, 0, 8], sizes = [2, 8, 8], strides = [1, 1, 1]} : vector<2x8x32xbf16> to vector<2x8x8xbf16>
    %35 = vector.extract_strided_slice %16 {offsets = [0, 0, 8], sizes = [2, 8, 8], strides = [1, 1, 1]} : vector<2x8x32xbf16> to vector<2x8x8xbf16>
    "tpu.trace_start"() <{level = 10 : i32, message = "bqd,bkd->bqk"}> : () -> ()
    %cst_10 = arith.constant dense<0.000000e+00> : vector<2x8x8xf32>
    %36 = tpu.matmul %33, %34, %cst_10 {dimension_numbers = #tpu.dot_dimension_numbers<[2], [2], [1], [1], [0, 0, 0, 1, 1, 1], [0], [0]>} : vector<2x8x8xbf16>, vector<2x8x8xbf16>, vector<2x8x8xf32> -> vector<2x8x8xf32>
    "tpu.trace_stop"() : () -> ()
    %cst_11 = arith.constant dense<0xFF800000> : vector<2x8xf32>
    %37 = vector.multi_reduction <maximumf>, %36, %cst_11 [2] : vector<2x8x8xf32> to vector<2x8xf32>
    %38 = vector.shape_cast %37 : vector<2x8xf32> to vector<2x8x1xf32>
    %39 = vector.broadcast %38 : vector<2x8x1xf32> to vector<2x8x8xf32>
    %40 = arith.subf %36, %39 : vector<2x8x8xf32>
    %41 = math.exp %40 : vector<2x8x8xf32>
    %cst_12 = arith.constant dense<0.000000e+00> : vector<2x8xf32>
    %42 = vector.multi_reduction <add>, %41, %cst_12 [2] : vector<2x8x8xf32> to vector<2x8xf32>
    %43 = vector.shape_cast %42 : vector<2x8xf32> to vector<2x8x1xf32>
    %44 = tpu.reciprocal %43 {approx = true} : vector<2x8x1xf32> -> vector<2x8x1xf32>
    %45 = vector.broadcast %44 : vector<2x8x1xf32> to vector<2x8x8xf32>
    %46 = arith.mulf %41, %45 : vector<2x8x8xf32>
    %47 = arith.truncf %46 : vector<2x8x8xf32> to vector<2x8x8xbf16>
    "tpu.trace_start"() <{level = 10 : i32, message = "bqk,bkd->bqd"}> : () -> ()
    %cst_13 = arith.constant dense<0.000000e+00> : vector<2x8x8xf32>
    %48 = tpu.matmul %47, %35, %cst_13 {dimension_numbers = #tpu.dot_dimension_numbers<[2], [1], [1], [2], [0, 0, 0, 1, 1, 2], [0], [0]>} : vector<2x8x8xbf16>, vector<2x8x8xbf16>, vector<2x8x8xf32> -> vector<2x8x8xf32>
    "tpu.trace_stop"() : () -> ()
    %49 = vector.extract_strided_slice %12 {offsets = [0, 0, 16], sizes = [2, 8, 8], strides = [1, 1, 1]} : vector<2x8x32xbf16> to vector<2x8x8xbf16>
    %50 = vector.extract_strided_slice %14 {offsets = [0, 0, 16], sizes = [2, 8, 8], strides = [1, 1, 1]} : vector<2x8x32xbf16> to vector<2x8x8xbf16>
    %51 = vector.extract_strided_slice %16 {offsets = [0, 0, 16], sizes = [2, 8, 8], strides = [1, 1, 1]} : vector<2x8x32xbf16> to vector<2x8x8xbf16>
    "tpu.trace_start"() <{level = 10 : i32, message = "bqd,bkd->bqk"}> : () -> ()
    %cst_14 = arith.constant dense<0.000000e+00> : vector<2x8x8xf32>
    %52 = tpu.matmul %49, %50, %cst_14 {dimension_numbers = #tpu.dot_dimension_numbers<[2], [2], [1], [1], [0, 0, 0, 1, 1, 1], [0], [0]>} : vector<2x8x8xbf16>, vector<2x8x8xbf16>, vector<2x8x8xf32> -> vector<2x8x8xf32>
    "tpu.trace_stop"() : () -> ()
    %cst_15 = arith.constant dense<0xFF800000> : vector<2x8xf32>
    %53 = vector.multi_reduction <maximumf>, %52, %cst_15 [2] : vector<2x8x8xf32> to vector<2x8xf32>
    %54 = vector.shape_cast %53 : vector<2x8xf32> to vector<2x8x1xf32>
    %55 = vector.broadcast %54 : vector<2x8x1xf32> to vector<2x8x8xf32>
    %56 = arith.subf %52, %55 : vector<2x8x8xf32>
    %57 = math.exp %56 : vector<2x8x8xf32>
    %cst_16 = arith.constant dense<0.000000e+00> : vector<2x8xf32>
    %58 = vector.multi_reduction <add>, %57, %cst_16 [2] : vector<2x8x8xf32> to vector<2x8xf32>
    %59 = vector.shape_cast %58 : vector<2x8xf32> to vector<2x8x1xf32>
    %60 = tpu.reciprocal %59 {approx = true} : vector<2x8x1xf32> -> vector<2x8x1xf32>
    %61 = vector.broadcast %60 : vector<2x8x1xf32> to vector<2x8x8xf32>
    %62 = arith.mulf %57, %61 : vector<2x8x8xf32>
    %63 = arith.truncf %62 : vector<2x8x8xf32> to vector<2x8x8xbf16>
    "tpu.trace_start"() <{level = 10 : i32, message = "bqk,bkd->bqd"}> : () -> ()
    %cst_17 = arith.constant dense<0.000000e+00> : vector<2x8x8xf32>
    %64 = tpu.matmul %63, %51, %cst_17 {dimension_numbers = #tpu.dot_dimension_numbers<[2], [1], [1], [2], [0, 0, 0, 1, 1, 2], [0], [0]>} : vector<2x8x8xbf16>, vector<2x8x8xbf16>, vector<2x8x8xf32> -> vector<2x8x8xf32>
    "tpu.trace_stop"() : () -> ()
    %65 = vector.extract_strided_slice %12 {offsets = [0, 0, 24], sizes = [2, 8, 8], strides = [1, 1, 1]} : vector<2x8x32xbf16> to vector<2x8x8xbf16>
    %66 = vector.extract_strided_slice %14 {offsets = [0, 0, 24], sizes = [2, 8, 8], strides = [1, 1, 1]} : vector<2x8x32xbf16> to vector<2x8x8xbf16>
    %67 = vector.extract_strided_slice %16 {offsets = [0, 0, 24], sizes = [2, 8, 8], strides = [1, 1, 1]} : vector<2x8x32xbf16> to vector<2x8x8xbf16>
    "tpu.trace_start"() <{level = 10 : i32, message = "bqd,bkd->bqk"}> : () -> ()
    %cst_18 = arith.constant dense<0.000000e+00> : vector<2x8x8xf32>
    %68 = tpu.matmul %65, %66, %cst_18 {dimension_numbers = #tpu.dot_dimension_numbers<[2], [2], [1], [1], [0, 0, 0, 1, 1, 1], [0], [0]>} : vector<2x8x8xbf16>, vector<2x8x8xbf16>, vector<2x8x8xf32> -> vector<2x8x8xf32>
    "tpu.trace_stop"() : () -> ()
    %cst_19 = arith.constant dense<0xFF800000> : vector<2x8xf32>
    %69 = vector.multi_reduction <maximumf>, %68, %cst_19 [2] : vector<2x8x8xf32> to vector<2x8xf32>
    %70 = vector.shape_cast %69 : vector<2x8xf32> to vector<2x8x1xf32>
    %71 = vector.broadcast %70 : vector<2x8x1xf32> to vector<2x8x8xf32>
    %72 = arith.subf %68, %71 : vector<2x8x8xf32>
    %73 = math.exp %72 : vector<2x8x8xf32>
    %cst_20 = arith.constant dense<0.000000e+00> : vector<2x8xf32>
    %74 = vector.multi_reduction <add>, %73, %cst_20 [2] : vector<2x8x8xf32> to vector<2x8xf32>
    %75 = vector.shape_cast %74 : vector<2x8xf32> to vector<2x8x1xf32>
    %76 = tpu.reciprocal %75 {approx = true} : vector<2x8x1xf32> -> vector<2x8x1xf32>
    %77 = vector.broadcast %76 : vector<2x8x1xf32> to vector<2x8x8xf32>
    %78 = arith.mulf %73, %77 : vector<2x8x8xf32>
    %79 = arith.truncf %78 : vector<2x8x8xf32> to vector<2x8x8xbf16>
    "tpu.trace_start"() <{level = 10 : i32, message = "bqk,bkd->bqd"}> : () -> ()
    %cst_21 = arith.constant dense<0.000000e+00> : vector<2x8x8xf32>
    %80 = tpu.matmul %79, %67, %cst_21 {dimension_numbers = #tpu.dot_dimension_numbers<[2], [1], [1], [2], [0, 0, 0, 1, 1, 2], [0], [0]>} : vector<2x8x8xbf16>, vector<2x8x8xbf16>, vector<2x8x8xf32> -> vector<2x8x8xf32>
    "tpu.trace_stop"() : () -> ()
    %81 = tpu.concatenate %32, %48, %64, %80 in 2 : vector<2x8x8xf32>, vector<2x8x8xf32>, vector<2x8x8xf32>, vector<2x8x8xf32> -> vector<2x8x32xf32>
    %82 = vector.shape_cast %81 : vector<2x8x32xf32> to vector<16x32xf32>
    %83 = arith.truncf %82 : vector<16x32xf32> to vector<16x32xbf16>
    %c0_22 = arith.constant 0 : index
    %c0_23 = arith.constant 0 : index
    %84 = vector.load %arg4[%c0_22, %c0_23] : memref<32x32xbf16, #tpu.memory_space<vmem>>, vector<32x32xbf16>
    %cst_24 = arith.constant dense<0.000000e+00> : vector<16x32xf32>
    %85 = tpu.matmul %83, %84, %cst_24 {dimension_numbers = #tpu.dot_dimension_numbers<[1], [0], [0], [1], [0, 0, 1, 1], [], []>} : vector<16x32xbf16>, vector<32x32xbf16>, vector<16x32xf32> -> vector<16x32xf32>
    %c0_25 = arith.constant 0 : index
    %c0_26 = arith.constant 0 : index
    %86 = vector.load %arg5[%c0_25, %c0_26] : memref<1x32xf32, #tpu.memory_space<vmem>>, vector<1x32xf32>
    %87 = vector.broadcast %86 : vector<1x32xf32> to vector<16x32xf32>
    %88 = arith.addf %85, %87 : vector<16x32xf32>
    %89 = tpu.concatenate %88, %5 in 1 : vector<16x32xf32>, vector<16x96xf32> -> vector<16x128xf32>
    %c0_27 = arith.constant 0 : index
    %c0_28 = arith.constant 0 : index
    %90 = vector.load %arg6[%c0_27, %c0_28] : memref<16x128xf32, #tpu.memory_space<vmem>>, vector<16x128xf32>
    tpu.vector_store %arg6[%c0_27, %c0_28], %89 {strides = array<i32>} : memref<16x128xf32, #tpu.memory_space<vmem>>, vector<16x128xf32>,
    return
  }
  func.func @transform_0(%arg0: i32) -> (i32, i32) {
    %c0_i32 = arith.constant 0 : i32
    %c0_i32_0 = arith.constant 0 : i32
    return %arg0, %c0_i32 : i32, i32
  }
  func.func @transform_1(%arg0: i32) -> (i32, i32) {
    %c0_i32 = arith.constant 0 : i32
    %c0_i32_0 = arith.constant 0 : i32
    %c0_i32_1 = arith.constant 0 : i32
    return %c0_i32, %c0_i32_0 : i32, i32
  }
  func.func @transform_2(%arg0: i32) -> (i32, i32) {
    %c0_i32 = arith.constant 0 : i32
    %c0_i32_0 = arith.constant 0 : i32
    %c0_i32_1 = arith.constant 0 : i32
    return %c0_i32, %c0_i32_0 : i32, i32
  }
  func.func @transform_3(%arg0: i32) -> (i32, i32) {
    %c0_i32 = arith.constant 0 : i32
    %c0_i32_0 = arith.constant 0 : i32
    %c0_i32_1 = arith.constant 0 : i32
    return %c0_i32, %c0_i32_0 : i32, i32
  }
  func.func @transform_4(%arg0: i32) -> (i32, i32) {
    %c0_i32 = arith.constant 0 : i32
    %c0_i32_0 = arith.constant 0 : i32
    %c0_i32_1 = arith.constant 0 : i32
    return %c0_i32, %c0_i32_0 : i32, i32
  }
  func.func @transform_5(%arg0: i32) -> (i32, i32) {
    %c0_i32 = arith.constant 0 : i32
    %c0_i32_0 = arith.constant 0 : i32
    return %arg0, %c0_i32 : i32, i32
  }
}

</mosaic_0001>

<llo_original>
// kernel: tpu_custom_call.1
$region0: #{tpu_custom_call.1}
  #allocation0 [shape = 'u32[]', space=smem, size = 0x4, offset = 0x4, fixed_abs, tag = 'smem constant byte address 0x4 - core index']
  #allocation1 [shape = 'u32[144,128]{1,0:T(1,128)}', space=vmem, size = 0x12000, scoped, tag = 'internal scratch']
  %s0 = inlined_call_operand.hbm [shape: bf16[16,32], index: 0, kind: input, shape index: {}]
  %s1 = inlined_call_operand.hbm [shape: bf16[32,96], index: 1, kind: input, shape index: {}]
  %s2 = inlined_call_operand.vmem [shape: f32[1,96], index: 2, kind: input, shape index: {}]
  %s3 = inlined_call_operand.hbm [shape: bf16[32,32], index: 3, kind: input, shape index: {}]
  %s4 = inlined_call_operand.vmem [shape: f32[1,32], index: 4, kind: input, shape index: {}]
  %s5 = inlined_call_operand.hbm [shape: f32[16,128], index: 5, kind: output, shape index: {}]
  %s6 = sld [smem:[#allocation0]]
  $region42: #{tpu_custom_call.1} parent=0
    _
  %s8 = ssub.s32 1, %s6
  %s9 = scalar_select 0, %s8, %s6
  $region1: #{tpu_custom_call.1} parent=0
    #allocation2 [shape = 'u8[4096]{0}', space=vmem, size = 0x1000, scoped, tag = 'input window, operand 0, single buffered']
    #allocation3 [shape = 's32[1]{0}', space=sflag, size = 0x4, scoped, tag = 'scoped memory for tpu_custom_call.1']
    #allocation4 [shape = 's32[1]{0}', space=sflag, size = 0x4, scoped, tag = 'scoped memory for tpu_custom_call.1']
    #allocation5 [shape = 'u8[8192]{0}', space=vmem, size = 0x2000, scoped, tag = 'input window, operand 1, single buffered']
    #allocation6 [shape = 's32[1]{0}', space=sflag, size = 0x4, scoped, tag = 'scoped memory for tpu_custom_call.1']
    #allocation7 [shape = 'u8[8192]{0}', space=vmem, size = 0x2000, scoped, tag = 'input window, operand 3, single buffered']
    #allocation8 [shape = 'u8[8192]{0}', space=vmem, size = 0x2000, scoped, tag = 'output window, operand 0, single buffered']
    %10 = vsyncpa [#allocation3], 0
    %11 = vsyncpa [#allocation6], 0
    %12 = vsyncpa [#allocation4], 0
    // Predicated region
    $region2: #{tpu_custom_call.1} parent=1 // pred_check
      _
    $region3: #{tpu_custom_call.1} parent=1 // pred_check_branch
      %14 = sbr.rel (0) target = $region5
    $region4: #{tpu_custom_call.1} parent=1 // pred_region
      %s16 = ssub.s32 128, 128
      %17 = vsyncadd [#allocation3], %s16
      %s18 = sshll.u32 [#allocation2], 4
      %s19 = int_to_ptr.vmem [resolvable:$true] %s18
      %24 = dma.hbm_to_vmem [thread:$0]  %s0, 128, %s19, [#allocation3], 64, 64, 4
    $region5: #{tpu_custom_call.1} parent=1 // pred_fallthru
      _
    // Predicated region
    $region6: #{tpu_custom_call.1} parent=1 // pred_check
      _
    $region7: #{tpu_custom_call.1} parent=1 // pred_check_branch
      %26 = sbr.rel (0) target = $region9
    $region8: #{tpu_custom_call.1} parent=1 // pred_region
      %s28 = ssub.s32 256, 256
      %29 = vsyncadd [#allocation6], %s28
      %s30 = sshll.u32 [#allocation5], 4
      %s31 = int_to_ptr.vmem [resolvable:$true] %s30
      %36 = dma.hbm_to_vmem [thread:$0]  %s1, 256, %s31, [#allocation6], 64, 64, 4
    $region9: #{tpu_custom_call.1} parent=1 // pred_fallthru
      _
    // Predicated region
    $region10: #{tpu_custom_call.1} parent=1 // pred_check
      _
    $region11: #{tpu_custom_call.1} parent=1 // pred_check_branch
      %38 = sbr.rel (0) target = $region13
    $region12: #{tpu_custom_call.1} parent=1 // pred_region
      _
    $region13: #{tpu_custom_call.1} parent=1 // pred_fallthru
      _
    // Predicated region
    $region14: #{tpu_custom_call.1} parent=1 // pred_check
      _
    $region15: #{tpu_custom_call.1} parent=1 // pred_check_branch
      %40 = sbr.rel (0) target = $region17
    $region16: #{tpu_custom_call.1} parent=1 // pred_region
      %s42 = ssub.s32 256, 256
      %43 = vsyncadd [#allocation6], %s42
      %s44 = sshll.u32 [#allocation7], 4
      %s45 = int_to_ptr.vmem [resolvable:$true] %s44
      %50 = dma.hbm_to_vmem [thread:$0]  %s3, 256, %s45, [#allocation6], 64, 64, 4
    $region17: #{tpu_custom_call.1} parent=1 // pred_fallthru
      _
    // Predicated region
    $region18: #{tpu_custom_call.1} parent=1 // pred_check
      _
    $region19: #{tpu_custom_call.1} parent=1 // pred_check_branch
      %52 = sbr.rel (0) target = $region21
    $region20: #{tpu_custom_call.1} parent=1 // pred_region
      _
    $region21: #{tpu_custom_call.1} parent=1 // pred_fallthru
      _
    // Predicated region
    $region22: #{tpu_custom_call.1} parent=1 // pred_check
      _
    $region23: #{tpu_custom_call.1} parent=1 // pred_check_branch
      %54 = sbr.rel (0) target = $region25
    $region24: #{tpu_custom_call.1} parent=1 // pred_region
      %55 = dma.done [#allocation3], 128
    $region25: #{tpu_custom_call.1} parent=1 // pred_fallthru
      _
    // Predicated region
    $region26: #{tpu_custom_call.1} parent=1 // pred_check
      _
    $region27: #{tpu_custom_call.1} parent=1 // pred_check_branch
      %57 = sbr.rel (0) target = $region29
    $region28: #{tpu_custom_call.1} parent=1 // pred_region
      %58 = dma.done [#allocation6], 256
    $region29: #{tpu_custom_call.1} parent=1 // pred_fallthru
      _
    // Predicated region
    $region30: #{tpu_custom_call.1} parent=1 // pred_check
      _
    $region31: #{tpu_custom_call.1} parent=1 // pred_check_branch
      %60 = sbr.rel (0) target = $region33
    $region32: #{tpu_custom_call.1} parent=1 // pred_region
      %61 = dma.done [#allocation6], 256
    $region33: #{tpu_custom_call.1} parent=1 // pred_fallthru
      _
    %v63 = vld [vmem:[#allocation2] sm:$0xf]
    %v64 = vld [vmem:[#allocation2 + $0x4] sm:$0xf]
    %v65 = vld [vmem:[#allocation5] sm:$0xf]
    %v66 = vld [vmem:[#allocation5 + $0x4] sm:$0xf]
    %v67 = vld [vmem:[#allocation5 + $0x8] sm:$0xf]
    %v68 = vld [vmem:[#allocation5 + $0xc] sm:$0xf]
    %v69 = vld [vmem:[%s2] sm:$0x1]
    %v71 = vlaneseq
    %v72 = vshrl.u32 %v71, 7
    %v73 = vsub.s32 0, %v72
    %v74 = vrot.slane %v69, %v73
    %v78 = vunpack.c.l.b16 %v63
    %v79 = vunpack.c.l.b16 %v64
    %v80 = vpack.c.b16 %v79, %v78
    %v85 = vunpack.c.l.b16 %v65
    %v86 = vunpack.c.l.b16 %v66
    %v87 = vunpack.c.l.b16 %v67
    %v88 = vunpack.c.l.b16 %v68
    %v89 = vpack.c.b16 %v86, %v85
    %v90 = vpack.c.b16 %v88, %v87
    %vm93 = vcmask 261120
    %v95 = vsel %vm93, %v80, 0
    %97 = vmatprep.subr.bf16.mxu0 0
    %98 = vmatpush1.bf16.msra.mxu0 %v89
    %99 = vmatprep.subr.bf16.mxu0 0
    %100 = vmatpush1.bf16.msra.mxu0 %v90
    %101 = vmatprep.subr.bf16.mxu0 0
    %102 = vmatpush1.bf16.msra.mxu0 0
    %103 = vmatprep.subr.bf16.mxu0 0
    %104 = vmatpush1.bf16.msra.mxu0 0
    %105 = vmatprep.subr.bf16.mxu0 0
    %106 = vmatpush1.bf16.msra.mxu0 0
    %107 = vmatprep.subr.bf16.mxu0 0
    %108 = vmatpush1.bf16.msra.mxu0 0
    %109 = vmatprep.subr.bf16.mxu0 0
    %110 = vmatpush1.bf16.msra.mxu0 0
    %111 = vmatprep.subr.bf16.mxu0 0
    %112 = vmatpush1.bf16.msra.mxu0 0
    %113 = vmatprep.subr.bf16.mxu0 0
    %114 = vmatpush1.bf16.msra.mxu0 0
    %115 = vmatprep.subr.bf16.mxu0 0
    %116 = vmatpush1.bf16.msra.mxu0 0
    %117 = vmatprep.subr.bf16.mxu0 0
    %118 = vmatpush1.bf16.msra.mxu0 0
    %119 = vmatprep.subr.bf16.mxu0 0
    %120 = vmatpush1.bf16.msra.mxu0 0
    %121 = vmatprep.subr.bf16.mxu0 0
    %122 = vmatpush1.bf16.msra.mxu0 0
    %123 = vmatprep.subr.bf16.mxu0 0
    %124 = vmatpush1.bf16.msra.mxu0 0
    %125 = vmatprep.subr.bf16.mxu0 0
    %126 = vmatpush1.bf16.msra.mxu0 0
    %127 = vmatprep.subr.bf16.mxu0 0
    %128 = vmatpush1.bf16.msra.mxu0 0
    %129 = vmatprep.mubr.bf16.mxu0 0
    %130 = vmatmul.mubr.bf16.gmra.mrb[0].mxu0 %v95
    %v131 = vpop.f32.mrb[0].mxu0
    %v132 = vadd.f32 %v74, %v131
    %v133 = vpop.f32.mrb[0].mxu0
    %v134 = vpop.f32.mrb[0].mxu0
    %v135 = vadd.f32 %v74, %v134
    %v136 = vpop.f32.mrb[0].mxu0
    %137 = vdwg.mxu0
    %v138 = vmul.f32 %v132, 0.35355338
    %v139 = vmul.f32 %v135, 0.35355338
    %v140 = vpack.c.bf16 %v139, %v138
    %v142 = vunpack.c.l.b16 %v140
    %v143 = vunpack.c.h.b16 %v140
    %v144 = vpack.c.b16 %v142, %v142
    %v145 = vpack.c.b16 %v143, %v143
    %v146 = vpack.c.bf16 %v135, %v132
    %v148 = vunpack.c.l.b16 %v146
    %v149 = vunpack.c.h.b16 %v146
    %v150 = vpack.c.b16 %v148, %v148
    %151 = vrot.lane.b32.xlu0 %v150, 96
    %v152 = vpop.permute.xlu0 %151
    %vm153 = vcmask 64512
    %v155 = vsel %vm153, %v144, 0
    %v158 = vsel %vm153, %v152, 0
    %160 = vmatprep.subr.bf16.mxu0 0
    %161 = vmatpush1.bf16.xpose.msra.mxu0 %v158
    %162 = vmatprep.subr.bf16.mxu0 0
    %163 = vmatpush1.bf16.xpose.msra.mxu0 0
    %164 = vmatprep.subr.bf16.mxu0 0
    %165 = vmatpush1.bf16.xpose.msra.mxu0 0
    %166 = vmatprep.subr.bf16.mxu0 0
    %167 = vmatpush1.bf16.xpose.msra.mxu0 0
    %168 = vmatprep.subr.bf16.mxu0 0
    %169 = vmatpush1.bf16.xpose.msra.mxu0 0
    %170 = vmatprep.subr.bf16.mxu0 0
    %171 = vmatpush1.bf16.xpose.msra.mxu0 0
    %172 = vmatprep.subr.bf16.mxu0 0
    %173 = vmatpush1.bf16.xpose.msra.mxu0 0
    %174 = vmatprep.subr.bf16.mxu0 0
    %175 = vmatpush1.bf16.xpose.msra.mxu0 0
    %176 = vmatprep.subr.bf16.mxu0 0
    %177 = vmatpush1.bf16.xpose.msra.mxu0 0
    %178 = vmatprep.subr.bf16.mxu0 0
    %179 = vmatpush1.bf16.xpose.msra.mxu0 0
    %180 = vmatprep.subr.bf16.mxu0 0
    %181 = vmatpush1.bf16.xpose.msra.mxu0 0
    %182 = vmatprep.subr.bf16.mxu0 0
    %183 = vmatpush1.bf16.xpose.msra.mxu0 0
    %184 = vmatprep.subr.bf16.mxu0 0
    %185 = vmatpush1.bf16.xpose.msra.mxu0 0
    %186 = vmatprep.subr.bf16.mxu0 0
    %187 = vmatpush1.bf16.xpose.msra.mxu0 0
    %188 = vmatprep.subr.bf16.mxu0 0
    %189 = vmatpush1.bf16.xpose.msra.mxu0 0
    %190 = vmatprep.subr.bf16.mxu0 0
    %191 = vmatpush1.bf16.xpose.msra.mxu0 0
    %192 = vmatprep.mubr.bf16.mxu0 0
    %193 = vmatmul.mubr.bf16.gmra.mrb[0].mxu0 %v155
    %v194 = vpop.f32.mrb[0].mxu0
    %v195 = vadd.f32 0.0, %v194
    %v196 = vpop.f32.mrb[0].mxu0
    %v197 = vpop.f32.mrb[0].mxu0
    %v198 = vpop.f32.mrb[0].mxu0
    %199 = vdwg.mxu0
    %v200 = vpack.c.b16 %v149, %v149
    %201 = vrot.lane.b32.xlu0 %v200, 96
    %v202 = vpop.permute.xlu0 %201
    %v204 = vsel %vm153, %v145, 0
    %v207 = vsel %vm153, %v202, 0
    %209 = vmatprep.subr.bf16.mxu0 0
    %210 = vmatpush1.bf16.xpose.msra.mxu0 %v207
    %211 = vmatprep.subr.bf16.mxu0 0
    %212 = vmatpush1.bf16.xpose.msra.mxu0 0
    %213 = vmatprep.subr.bf16.mxu0 0
    %214 = vmatpush1.bf16.xpose.msra.mxu0 0
    %215 = vmatprep.subr.bf16.mxu0 0
    %216 = vmatpush1.bf16.xpose.msra.mxu0 0
    %217 = vmatprep.subr.bf16.mxu0 0
    %218 = vmatpush1.bf16.xpose.msra.mxu0 0
    %219 = vmatprep.subr.bf16.mxu0 0
    %220 = vmatpush1.bf16.xpose.msra.mxu0 0
    %221 = vmatprep.subr.bf16.mxu0 0
    %222 = vmatpush1.bf16.xpose.msra.mxu0 0
    %223 = vmatprep.subr.bf16.mxu0 0
    %224 = vmatpush1.bf16.xpose.msra.mxu0 0
    %225 = vmatprep.subr.bf16.mxu0 0
    %226 = vmatpush1.bf16.xpose.msra.mxu0 0
    %227 = vmatprep.subr.bf16.mxu0 0
    %228 = vmatpush1.bf16.xpose.msra.mxu0 0
    %229 = vmatprep.subr.bf16.mxu0 0
    %230 = vmatpush1.bf16.xpose.msra.mxu0 0
    %231 = vmatprep.subr.bf16.mxu0 0
    %232 = vmatpush1.bf16.xpose.msra.mxu0 0
    %233 = vmatprep.subr.bf16.mxu0 0
    %234 = vmatpush1.bf16.xpose.msra.mxu0 0
    %235 = vmatprep.subr.bf16.mxu0 0
    %236 = vmatpush1.bf16.xpose.msra.mxu0 0
    %237 = vmatprep.subr.bf16.mxu0 0
    %238 = vmatpush1.bf16.xpose.msra.mxu0 0
    %239 = vmatprep.subr.bf16.mxu0 0
    %240 = vmatpush1.bf16.xpose.msra.mxu0 0
    %241 = vmatprep.mubr.bf16.mxu0 0
    %242 = vmatmul.mubr.bf16.gmra.mrb[0].mxu0 %v204
    %v243 = vpop.f32.mrb[0].mxu0
    %v244 = vadd.f32 0.0, %v243
    %v245 = vpop.f32.mrb[0].mxu0
    %v246 = vpop.f32.mrb[0].mxu0
    %v247 = vpop.f32.mrb[0].mxu0
    %248 = vdwg.mxu0
    %v249 = vsel %vm153, %v195, -inf
    %250 = vmax.xlane.f32.xlu0 %v249
    %v251 = vpop.xlane.xlu0 %250
    %v252 = vsel %vm153, %v244, -inf
    %253 = vmax.xlane.f32.xlu0 %v252
    %v254 = vpop.xlane.xlu0 %253
    %v255 = vsub.f32 %v195, %v251
    %v256 = vsub.f32 %v244, %v254
    %v257 = vmul.f32 %v255, 1.442695
    %v258 = vpow.pop %v257
    %v259 = vmul.f32 %v256, 1.442695
    %v260 = vpow.pop %v259
    %v261 = vsel %vm153, %v258, 0.0
    %262 = vadd.xlane.f32.xlu0 %v261
    %v263 = vpop.xlane.xlu0 %262
    %v264 = vsel %vm153, %v260, 0.0
    %265 = vadd.xlane.f32.xlu0 %v264
    %v266 = vpop.xlane.xlu0 %265
    %v267 = vrcp.pop %v263
    %v268 = vrcp.pop %v266
    %v269 = vmul.f32 %v258, %v267
    %v270 = vmul.f32 %v260, %v268
    %v271 = vpack.c.bf16 %v269, %v269
    %v272 = vpack.c.bf16 %v270, %v270
    %273 = vrot.lane.b32.xlu0 %v150, 64
    %v274 = vpop.permute.xlu0 %273
    %v276 = vsel %vm153, %v271, 0
    %vm278 = vcmask 1043456
    %v280 = vsel %vm278, %v274, 0
    %282 = vmatprep.subr.bf16.mxu0 0
    %283 = vmatpush1.bf16.msra.mxu0 %v280
    %284 = vmatprep.subr.bf16.mxu0 0
    %285 = vmatpush1.bf16.msra.mxu0 0
    %286 = vmatprep.subr.bf16.mxu0 0
    %287 = vmatpush1.bf16.msra.mxu0 0
    %288 = vmatprep.subr.bf16.mxu0 0
    %289 = vmatpush1.bf16.msra.mxu0 0
    %290 = vmatprep.subr.bf16.mxu0 0
    %291 = vmatpush1.bf16.msra.mxu0 0
    %292 = vmatprep.subr.bf16.mxu0 0
    %293 = vmatpush1.bf16.msra.mxu0 0
    %294 = vmatprep.subr.bf16.mxu0 0
    %295 = vmatpush1.bf16.msra.mxu0 0
    %296 = vmatprep.subr.bf16.mxu0 0
    %297 = vmatpush1.bf16.msra.mxu0 0
    %298 = vmatprep.subr.bf16.mxu0 0
    %299 = vmatpush1.bf16.msra.mxu0 0
    %300 = vmatprep.subr.bf16.mxu0 0
    %301 = vmatpush1.bf16.msra.mxu0 0
    %302 = vmatprep.subr.bf16.mxu0 0
    %303 = vmatpush1.bf16.msra.mxu0 0
    %304 = vmatprep.subr.bf16.mxu0 0
    %305 = vmatpush1.bf16.msra.mxu0 0
    %306 = vmatprep.subr.bf16.mxu0 0
    %307 = vmatpush1.bf16.msra.mxu0 0
    %308 = vmatprep.subr.bf16.mxu0 0
    %309 = vmatpush1.bf16.msra.mxu0 0
    %310 = vmatprep.subr.bf16.mxu0 0
    %311 = vmatpush1.bf16.msra.mxu0 0
    %312 = vmatprep.subr.bf16.mxu0 0
    %313 = vmatpush1.bf16.msra.mxu0 0
    %314 = vmatprep.mubr.bf16.mxu0 0
    %315 = vmatmul.mubr.bf16.gmra.mrb[0].mxu0 %v276
    %v316 = vpop.f32.mrb[0].mxu0
    %v317 = vadd.f32 0.0, %v316
    %v318 = vpop.f32.mrb[0].mxu0
    %v319 = vpop.f32.mrb[0].mxu0
    %v320 = vpop.f32.mrb[0].mxu0
    %321 = vdwg.mxu0
    %322 = vrot.lane.b32.xlu0 %v200, 64
    %v323 = vpop.permute.xlu0 %322
    %v325 = vsel %vm153, %v272, 0
    %v328 = vsel %vm278, %v323, 0
    %330 = vmatprep.subr.bf16.mxu0 0
    %331 = vmatpush1.bf16.msra.mxu0 %v328
    %332 = vmatprep.subr.bf16.mxu0 0
    %333 = vmatpush1.bf16.msra.mxu0 0
    %334 = vmatprep.subr.bf16.mxu0 0
    %335 = vmatpush1.bf16.msra.mxu0 0
    %336 = vmatprep.subr.bf16.mxu0 0
    %337 = vmatpush1.bf16.msra.mxu0 0
    %338 = vmatprep.subr.bf16.mxu0 0
    %339 = vmatpush1.bf16.msra.mxu0 0
    %340 = vmatprep.subr.bf16.mxu0 0
    %341 = vmatpush1.bf16.msra.mxu0 0
    %342 = vmatprep.subr.bf16.mxu0 0
    %343 = vmatpush1.bf16.msra.mxu0 0
    %344 = vmatprep.subr.bf16.mxu0 0
    %345 = vmatpush1.bf16.msra.mxu0 0
    %346 = vmatprep.subr.bf16.mxu0 0
    %347 = vmatpush1.bf16.msra.mxu0 0
    %348 = vmatprep.subr.bf16.mxu0 0
    %349 = vmatpush1.bf16.msra.mxu0 0
    %350 = vmatprep.subr.bf16.mxu0 0
    %351 = vmatpush1.bf16.msra.mxu0 0
    %352 = vmatprep.subr.bf16.mxu0 0
    %353 = vmatpush1.bf16.msra.mxu0 0
    %354 = vmatprep.subr.bf16.mxu0 0
    %355 = vmatpush1.bf16.msra.mxu0 0
    %356 = vmatprep.subr.bf16.mxu0 0
    %357 = vmatpush1.bf16.msra.mxu0 0
    %358 = vmatprep.subr.bf16.mxu0 0
    %359 = vmatpush1.bf16.msra.mxu0 0
    %360 = vmatprep.subr.bf16.mxu0 0
    %361 = vmatpush1.bf16.msra.mxu0 0
    %362 = vmatprep.mubr.bf16.mxu0 0
    %363 = vmatmul.mubr.bf16.gmra.mrb[0].mxu0 %v325
    %v364 = vpop.f32.mrb[0].mxu0
    %v365 = vadd.f32 0.0, %v364
    %v366 = vpop.f32.mrb[0].mxu0
    %v367 = vpop.f32.mrb[0].mxu0
    %v368 = vpop.f32.mrb[0].mxu0
    %369 = vdwg.mxu0
    %370 = vrot.lane.b32.xlu0 %v144, 120
    %v371 = vpop.permute.xlu0 %370
    %372 = vrot.lane.b32.xlu0 %v150, 88
    %v373 = vpop.permute.xlu0 %372
    %v375 = vsel %vm153, %v371, 0
    %v378 = vsel %vm153, %v373, 0
    %380 = vmatprep.subr.bf16.mxu0 0
    %381 = vmatpush1.bf16.xpose.msra.mxu0 %v378
    %382 = vmatprep.subr.bf16.mxu0 0
    %383 = vmatpush1.bf16.xpose.msra.mxu0 0
    %384 = vmatprep.subr.bf16.mxu0 0
    %385 = vmatpush1.bf16.xpose.msra.mxu0 0
    %386 = vmatprep.subr.bf16.mxu0 0
    %387 = vmatpush1.bf16.xpose.msra.mxu0 0
    %388 = vmatprep.subr.bf16.mxu0 0
    %389 = vmatpush1.bf16.xpose.msra.mxu0 0
    %390 = vmatprep.subr.bf16.mxu0 0
    %391 = vmatpush1.bf16.xpose.msra.mxu0 0
    %392 = vmatprep.subr.bf16.mxu0 0
    %393 = vmatpush1.bf16.xpose.msra.mxu0 0
    %394 = vmatprep.subr.bf16.mxu0 0
    %395 = vmatpush1.bf16.xpose.msra.mxu0 0
    %396 = vmatprep.subr.bf16.mxu0 0
    %397 = vmatpush1.bf16.xpose.msra.mxu0 0
    %398 = vmatprep.subr.bf16.mxu0 0
    %399 = vmatpush1.bf16.xpose.msra.mxu0 0
    %400 = vmatprep.subr.bf16.mxu0 0
    %401 = vmatpush1.bf16.xpose.msra.mxu0 0
    %402 = vmatprep.subr.bf16.mxu0 0
    %403 = vmatpush1.bf16.xpose.msra.mxu0 0
    %404 = vmatprep.subr.bf16.mxu0 0
    %405 = vmatpush1.bf16.xpose.msra.mxu0 0
    %406 = vmatprep.subr.bf16.mxu0 0
    %407 = vmatpush1.bf16.xpose.msra.mxu0 0
    %408 = vmatprep.subr.bf16.mxu0 0
    %409 = vmatpush1.bf16.xpose.msra.mxu0 0
    %410 = vmatprep.subr.bf16.mxu0 0
    %411 = vmatpush1.bf16.xpose.msra.mxu0 0
    %412 = vmatprep.mubr.bf16.mxu0 0
    %413 = vmatmul.mubr.bf16.gmra.mrb[0].mxu0 %v375
    %v414 = vpop.f32.mrb[0].mxu0
    %v415 = vadd.f32 0.0, %v414
    %v416 = vpop.f32.mrb[0].mxu0
    %v417 = vpop.f32.mrb[0].mxu0
    %v418 = vpop.f32.mrb[0].mxu0
    %419 = vdwg.mxu0
    %420 = vrot.lane.b32.xlu0 %v145, 120
    %v421 = vpop.permute.xlu0 %420
    %422 = vrot.lane.b32.xlu0 %v200, 88
    %v423 = vpop.permute.xlu0 %422
    %v425 = vsel %vm153, %v421, 0
    %v428 = vsel %vm153, %v423, 0
    %430 = vmatprep.subr.bf16.mxu0 0
    %431 = vmatpush1.bf16.xpose.msra.mxu0 %v428
    %432 = vmatprep.subr.bf16.mxu0 0
    %433 = vmatpush1.bf16.xpose.msra.mxu0 0
    %434 = vmatprep.subr.bf16.mxu0 0
    %435 = vmatpush1.bf16.xpose.msra.mxu0 0
    %436 = vmatprep.subr.bf16.mxu0 0
    %437 = vmatpush1.bf16.xpose.msra.mxu0 0
    %438 = vmatprep.subr.bf16.mxu0 0
    %439 = vmatpush1.bf16.xpose.msra.mxu0 0
    %440 = vmatprep.subr.bf16.mxu0 0
    %441 = vmatpush1.bf16.xpose.msra.mxu0 0
    %442 = vmatprep.subr.bf16.mxu0 0
    %443 = vmatpush1.bf16.xpose.msra.mxu0 0
    %444 = vmatprep.subr.bf16.mxu0 0
    %445 = vmatpush1.bf16.xpose.msra.mxu0 0
    %446 = vmatprep.subr.bf16.mxu0 0
    %447 = vmatpush1.bf16.xpose.msra.mxu0 0
    %448 = vmatprep.subr.bf16.mxu0 0
    %449 = vmatpush1.bf16.xpose.msra.mxu0 0
    %450 = vmatprep.subr.bf16.mxu0 0
    %451 = vmatpush1.bf16.xpose.msra.mxu0 0
    %452 = vmatprep.subr.bf16.mxu0 0
    %453 = vmatpush1.bf16.xpose.msra.mxu0 0
    %454 = vmatprep.subr.bf16.mxu0 0
    %455 = vmatpush1.bf16.xpose.msra.mxu0 0
    %456 = vmatprep.subr.bf16.mxu0 0
    %457 = vmatpush1.bf16.xpose.msra.mxu0 0
    %458 = vmatprep.subr.bf16.mxu0 0
    %459 = vmatpush1.bf16.xpose.msra.mxu0 0
    %460 = vmatprep.subr.bf16.mxu0 0
    %461 = vmatpush1.bf16.xpose.msra.mxu0 0
    %462 = vmatprep.mubr.bf16.mxu0 0
    %463 = vmatmul.mubr.bf16.gmra.mrb[0].mxu0 %v425
    %v464 = vpop.f32.mrb[0].mxu0
    %v465 = vadd.f32 0.0, %v464
    %v466 = vpop.f32.mrb[0].mxu0
    %v467 = vpop.f32.mrb[0].mxu0
    %v468 = vpop.f32.mrb[0].mxu0
    %469 = vdwg.mxu0
    %v470 = vsel %vm153, %v415, -inf
    %471 = vmax.xlane.f32.xlu0 %v470
    %v472 = vpop.xlane.xlu0 %471
    %v473 = vsel %vm153, %v465, -inf
    %474 = vmax.xlane.f32.xlu0 %v473
    %v475 = vpop.xlane.xlu0 %474
    %v476 = vsub.f32 %v415, %v472
    %v477 = vsub.f32 %v465, %v475
    %v478 = vmul.f32 %v476, 1.442695
    %v479 = vpow.pop %v478
    %v480 = vmul.f32 %v477, 1.442695
    %v481 = vpow.pop %v480
    %v482 = vsel %vm153, %v479, 0.0
    %483 = vadd.xlane.f32.xlu0 %v482
    %v484 = vpop.xlane.xlu0 %483
    %v485 = vsel %vm153, %v481, 0.0
    %486 = vadd.xlane.f32.xlu0 %v485
    %v487 = vpop.xlane.xlu0 %486
    %v488 = vrcp.pop %v484
    %v489 = vrcp.pop %v487
    %v490 = vmul.f32 %v479, %v488
    %v491 = vmul.f32 %v481, %v489
    %v492 = vpack.c.bf16 %v490, %v490
    %v493 = vpack.c.bf16 %v491, %v491
    %494 = vrot.lane.b32.xlu0 %v150, 56
    %v495 = vpop.permute.xlu0 %494
    %v497 = vsel %vm153, %v492, 0
    %v500 = vsel %vm278, %v495, 0
    %502 = vmatprep.subr.bf16.mxu0 0
    %503 = vmatpush1.bf16.msra.mxu0 %v500
    %504 = vmatprep.subr.bf16.mxu0 0
    %505 = vmatpush1.bf16.msra.mxu0 0
    %506 = vmatprep.subr.bf16.mxu0 0
    %507 = vmatpush1.bf16.msra.mxu0 0
    %508 = vmatprep.subr.bf16.mxu0 0
    %509 = vmatpush1.bf16.msra.mxu0 0
    %510 = vmatprep.subr.bf16.mxu0 0
    %511 = vmatpush1.bf16.msra.mxu0 0
    %512 = vmatprep.subr.bf16.mxu0 0
    %513 = vmatpush1.bf16.msra.mxu0 0
    %514 = vmatprep.subr.bf16.mxu0 0
    %515 = vmatpush1.bf16.msra.mxu0 0
    %516 = vmatprep.subr.bf16.mxu0 0
    %517 = vmatpush1.bf16.msra.mxu0 0
    %518 = vmatprep.subr.bf16.mxu0 0
    %519 = vmatpush1.bf16.msra.mxu0 0
    %520 = vmatprep.subr.bf16.mxu0 0
    %521 = vmatpush1.bf16.msra.mxu0 0
    %522 = vmatprep.subr.bf16.mxu0 0
    %523 = vmatpush1.bf16.msra.mxu0 0
    %524 = vmatprep.subr.bf16.mxu0 0
    %525 = vmatpush1.bf16.msra.mxu0 0
    %526 = vmatprep.subr.bf16.mxu0 0
    %527 = vmatpush1.bf16.msra.mxu0 0
    %528 = vmatprep.subr.bf16.mxu0 0
    %529 = vmatpush1.bf16.msra.mxu0 0
    %530 = vmatprep.subr.bf16.mxu0 0
    %531 = vmatpush1.bf16.msra.mxu0 0
    %532 = vmatprep.subr.bf16.mxu0 0
    %533 = vmatpush1.bf16.msra.mxu0 0
    %534 = vmatprep.mubr.bf16.mxu0 0
    %535 = vmatmul.mubr.bf16.gmra.mrb[0].mxu0 %v497
    %v536 = vpop.f32.mrb[0].mxu0
    %v537 = vadd.f32 0.0, %v536
    %v538 = vpop.f32.mrb[0].mxu0
    %v539 = vpop.f32.mrb[0].mxu0
    %v540 = vpop.f32.mrb[0].mxu0
    %541 = vdwg.mxu0
    %542 = vrot.lane.b32.xlu0 %v200, 56
    %v543 = vpop.permute.xlu0 %542
    %v545 = vsel %vm153, %v493, 0
    %v548 = vsel %vm278, %v543, 0
    %550 = vmatprep.subr.bf16.mxu0 0
    %551 = vmatpush1.bf16.msra.mxu0 %v548
    %552 = vmatprep.subr.bf16.mxu0 0
    %553 = vmatpush1.bf16.msra.mxu0 0
    %554 = vmatprep.subr.bf16.mxu0 0
    %555 = vmatpush1.bf16.msra.mxu0 0
    %556 = vmatprep.subr.bf16.mxu0 0
    %557 = vmatpush1.bf16.msra.mxu0 0
    %558 = vmatprep.subr.bf16.mxu0 0
    %559 = vmatpush1.bf16.msra.mxu0 0
    %560 = vmatprep.subr.bf16.mxu0 0
    %561 = vmatpush1.bf16.msra.mxu0 0
    %562 = vmatprep.subr.bf16.mxu0 0
    %563 = vmatpush1.bf16.msra.mxu0 0
    %564 = vmatprep.subr.bf16.mxu0 0
    %565 = vmatpush1.bf16.msra.mxu0 0
    %566 = vmatprep.subr.bf16.mxu0 0
    %567 = vmatpush1.bf16.msra.mxu0 0
    %568 = vmatprep.subr.bf16.mxu0 0
    %569 = vmatpush1.bf16.msra.mxu0 0
    %570 = vmatprep.subr.bf16.mxu0 0
    %571 = vmatpush1.bf16.msra.mxu0 0
    %572 = vmatprep.subr.bf16.mxu0 0
    %573 = vmatpush1.bf16.msra.mxu0 0
    %574 = vmatprep.subr.bf16.mxu0 0
    %575 = vmatpush1.bf16.msra.mxu0 0
    %576 = vmatprep.subr.bf16.mxu0 0
    %577 = vmatpush1.bf16.msra.mxu0 0
    %578 = vmatprep.subr.bf16.mxu0 0
    %579 = vmatpush1.bf16.msra.mxu0 0
    %580 = vmatprep.subr.bf16.mxu0 0
    %581 = vmatpush1.bf16.msra.mxu0 0
    %582 = vmatprep.mubr.bf16.mxu0 0
    %583 = vmatmul.mubr.bf16.gmra.mrb[0].mxu0 %v545
    %v584 = vpop.f32.mrb[0].mxu0
    %v585 = vadd.f32 0.0, %v584
    %v586 = vpop.f32.mrb[0].mxu0
    %v587 = vpop.f32.mrb[0].mxu0
    %v588 = vpop.f32.mrb[0].mxu0
    %589 = vdwg.mxu0
    %590 = vrot.lane.b32.xlu0 %v144, 112
    %v591 = vpop.permute.xlu0 %590
    %592 = vrot.lane.b32.xlu0 %v150, 80
    %v593 = vpop.permute.xlu0 %592
    %v595 = vsel %vm153, %v591, 0
    %v598 = vsel %vm153, %v593, 0
    %600 = vmatprep.subr.bf16.mxu0 0
    %601 = vmatpush1.bf16.xpose.msra.mxu0 %v598
    %602 = vmatprep.subr.bf16.mxu0 0
    %603 = vmatpush1.bf16.xpose.msra.mxu0 0
    %604 = vmatprep.subr.bf16.mxu0 0
    %605 = vmatpush1.bf16.xpose.msra.mxu0 0
    %606 = vmatprep.subr.bf16.mxu0 0
    %607 = vmatpush1.bf16.xpose.msra.mxu0 0
    %608 = vmatprep.subr.bf16.mxu0 0
    %609 = vmatpush1.bf16.xpose.msra.mxu0 0
    %610 = vmatprep.subr.bf16.mxu0 0
    %611 = vmatpush1.bf16.xpose.msra.mxu0 0
    %612 = vmatprep.subr.bf16.mxu0 0
    %613 = vmatpush1.bf16.xpose.msra.mxu0 0
    %614 = vmatprep.subr.bf16.mxu0 0
    %615 = vmatpush1.bf16.xpose.msra.mxu0 0
    %616 = vmatprep.subr.bf16.mxu0 0
    %617 = vmatpush1.bf16.xpose.msra.mxu0 0
    %618 = vmatprep.subr.bf16.mxu0 0
    %619 = vmatpush1.bf16.xpose.msra.mxu0 0
    %620 = vmatprep.subr.bf16.mxu0 0
    %621 = vmatpush1.bf16.xpose.msra.mxu0 0
    %622 = vmatprep.subr.bf16.mxu0 0
    %623 = vmatpush1.bf16.xpose.msra.mxu0 0
    %624 = vmatprep.subr.bf16.mxu0 0
    %625 = vmatpush1.bf16.xpose.msra.mxu0 0
    %626 = vmatprep.subr.bf16.mxu0 0
    %627 = vmatpush1.bf16.xpose.msra.mxu0 0
    %628 = vmatprep.subr.bf16.mxu0 0
    %629 = vmatpush1.bf16.xpose.msra.mxu0 0
    %630 = vmatprep.subr.bf16.mxu0 0
    %631 = vmatpush1.bf16.xpose.msra.mxu0 0
    %632 = vmatprep.mubr.bf16.mxu0 0
    %633 = vmatmul.mubr.bf16.gmra.mrb[0].mxu0 %v595
    %v634 = vpop.f32.mrb[0].mxu0
    %v635 = vadd.f32 0.0, %v634
    %v636 = vpop.f32.mrb[0].mxu0
    %v637 = vpop.f32.mrb[0].mxu0
    %v638 = vpop.f32.mrb[0].mxu0
    %639 = vdwg.mxu0
    %640 = vrot.lane.b32.xlu0 %v145, 112
    %v641 = vpop.permute.xlu0 %640
    %642 = vrot.lane.b32.xlu0 %v200, 80
    %v643 = vpop.permute.xlu0 %642
    %v645 = vsel %vm153, %v641, 0
    %v648 = vsel %vm153, %v643, 0
    %650 = vmatprep.subr.bf16.mxu0 0
    %651 = vmatpush1.bf16.xpose.msra.mxu0 %v648
    %652 = vmatprep.subr.bf16.mxu0 0
    %653 = vmatpush1.bf16.xpose.msra.mxu0 0
    %654 = vmatprep.subr.bf16.mxu0 0
    %655 = vmatpush1.bf16.xpose.msra.mxu0 0
    %656 = vmatprep.subr.bf16.mxu0 0
    %657 = vmatpush1.bf16.xpose.msra.mxu0 0
    %658 = vmatprep.subr.bf16.mxu0 0
    %659 = vmatpush1.bf16.xpose.msra.mxu0 0
    %660 = vmatprep.subr.bf16.mxu0 0
    %661 = vmatpush1.bf16.xpose.msra.mxu0 0
    %662 = vmatprep.subr.bf16.mxu0 0
    %663 = vmatpush1.bf16.xpose.msra.mxu0 0
    %664 = vmatprep.subr.bf16.mxu0 0
    %665 = vmatpush1.bf16.xpose.msra.mxu0 0
    %666 = vmatprep.subr.bf16.mxu0 0
    %667 = vmatpush1.bf16.xpose.msra.mxu0 0
    %668 = vmatprep.subr.bf16.mxu0 0
    %669 = vmatpush1.bf16.xpose.msra.mxu0 0
    %670 = vmatprep.subr.bf16.mxu0 0
    %671 = vmatpush1.bf16.xpose.msra.mxu0 0
    %672 = vmatprep.subr.bf16.mxu0 0
    %673 = vmatpush1.bf16.xpose.msra.mxu0 0
    %674 = vmatprep.subr.bf16.mxu0 0
    %675 = vmatpush1.bf16.xpose.msra.mxu0 0
    %676 = vmatprep.subr.bf16.mxu0 0
    %677 = vmatpush1.bf16.xpose.msra.mxu0 0
    %678 = vmatprep.subr.bf16.mxu0 0
    %679 = vmatpush1.bf16.xpose.msra.mxu0 0
    %680 = vmatprep.subr.bf16.mxu0 0
    %681 = vmatpush1.bf16.xpose.msra.mxu0 0
    %682 = vmatprep.mubr.bf16.mxu0 0
    %683 = vmatmul.mubr.bf16.gmra.mrb[0].mxu0 %v645
    %v684 = vpop.f32.mrb[0].mxu0
    %v685 = vadd.f32 0.0, %v684
    %v686 = vpop.f32.mrb[0].mxu0
    %v687 = vpop.f32.mrb[0].mxu0
    %v688 = vpop.f32.mrb[0].mxu0
    %689 = vdwg.mxu0
    %v690 = vsel %vm153, %v635, -inf
    %691 = vmax.xlane.f32.xlu0 %v690
    %v692 = vpop.xlane.xlu0 %691
    %v693 = vsel %vm153, %v685, -inf
    %694 = vmax.xlane.f32.xlu0 %v693
    %v695 = vpop.xlane.xlu0 %694
    %v696 = vsub.f32 %v635, %v692
    %v697 = vsub.f32 %v685, %v695
    %v698 = vmul.f32 %v696, 1.442695
    %v699 = vpow.pop %v698
    %v700 = vmul.f32 %v697, 1.442695
    %v701 = vpow.pop %v700
    %v702 = vsel %vm153, %v699, 0.0
    %703 = vadd.xlane.f32.xlu0 %v702
    %v704 = vpop.xlane.xlu0 %703
    %v705 = vsel %vm153, %v701, 0.0
    %706 = vadd.xlane.f32.xlu0 %v705
    %v707 = vpop.xlane.xlu0 %706
    %v708 = vrcp.pop %v704
    %v709 = vrcp.pop %v707
    %v710 = vmul.f32 %v699, %v708
    %v711 = vmul.f32 %v701, %v709
    %v712 = vpack.c.bf16 %v710, %v710
    %v713 = vpack.c.bf16 %v711, %v711
    %714 = vrot.lane.b32.xlu0 %v150, 48
    %v715 = vpop.permute.xlu0 %714
    %v717 = vsel %vm153, %v712, 0
    %v720 = vsel %vm278, %v715, 0
    %722 = vmatprep.subr.bf16.mxu0 0
    %723 = vmatpush1.bf16.msra.mxu0 %v720
    %724 = vmatprep.subr.bf16.mxu0 0
    %725 = vmatpush1.bf16.msra.mxu0 0
    %726 = vmatprep.subr.bf16.mxu0 0
    %727 = vmatpush1.bf16.msra.mxu0 0
    %728 = vmatprep.subr.bf16.mxu0 0
    %729 = vmatpush1.bf16.msra.mxu0 0
    %730 = vmatprep.subr.bf16.mxu0 0
    %731 = vmatpush1.bf16.msra.mxu0 0
    %732 = vmatprep.subr.bf16.mxu0 0
    %733 = vmatpush1.bf16.msra.mxu0 0
    %734 = vmatprep.subr.bf16.mxu0 0
    %735 = vmatpush1.bf16.msra.mxu0 0
    %736 = vmatprep.subr.bf16.mxu0 0
    %737 = vmatpush1.bf16.msra.mxu0 0
    %738 = vmatprep.subr.bf16.mxu0 0
    %739 = vmatpush1.bf16.msra.mxu0 0
    %740 = vmatprep.subr.bf16.mxu0 0
    %741 = vmatpush1.bf16.msra.mxu0 0
    %742 = vmatprep.subr.bf16.mxu0 0
    %743 = vmatpush1.bf16.msra.mxu0 0
    %744 = vmatprep.subr.bf16.mxu0 0
    %745 = vmatpush1.bf16.msra.mxu0 0
    %746 = vmatprep.subr.bf16.mxu0 0
    %747 = vmatpush1.bf16.msra.mxu0 0
    %748 = vmatprep.subr.bf16.mxu0 0
    %749 = vmatpush1.bf16.msra.mxu0 0
    %750 = vmatprep.subr.bf16.mxu0 0
    %751 = vmatpush1.bf16.msra.mxu0 0
    %752 = vmatprep.subr.bf16.mxu0 0
    %753 = vmatpush1.bf16.msra.mxu0 0
    %754 = vmatprep.mubr.bf16.mxu0 0
    %755 = vmatmul.mubr.bf16.gmra.mrb[0].mxu0 %v717
    %v756 = vpop.f32.mrb[0].mxu0
    %v757 = vadd.f32 0.0, %v756
    %v758 = vpop.f32.mrb[0].mxu0
    %v759 = vpop.f32.mrb[0].mxu0
    %v760 = vpop.f32.mrb[0].mxu0
    %761 = vdwg.mxu0
    %762 = vrot.lane.b32.xlu0 %v200, 48
    %v763 = vpop.permute.xlu0 %762
    %v765 = vsel %vm153, %v713, 0
    %v768 = vsel %vm278, %v763, 0
    %770 = vmatprep.subr.bf16.mxu0 0
    %771 = vmatpush1.bf16.msra.mxu0 %v768
    %772 = vmatprep.subr.bf16.mxu0 0
    %773 = vmatpush1.bf16.msra.mxu0 0
    %774 = vmatprep.subr.bf16.mxu0 0
    %775 = vmatpush1.bf16.msra.mxu0 0
    %776 = vmatprep.subr.bf16.mxu0 0
    %777 = vmatpush1.bf16.msra.mxu0 0
    %778 = vmatprep.subr.bf16.mxu0 0
    %779 = vmatpush1.bf16.msra.mxu0 0
    %780 = vmatprep.subr.bf16.mxu0 0
    %781 = vmatpush1.bf16.msra.mxu0 0
    %782 = vmatprep.subr.bf16.mxu0 0
    %783 = vmatpush1.bf16.msra.mxu0 0
    %784 = vmatprep.subr.bf16.mxu0 0
    %785 = vmatpush1.bf16.msra.mxu0 0
    %786 = vmatprep.subr.bf16.mxu0 0
    %787 = vmatpush1.bf16.msra.mxu0 0
    %788 = vmatprep.subr.bf16.mxu0 0
    %789 = vmatpush1.bf16.msra.mxu0 0
    %790 = vmatprep.subr.bf16.mxu0 0
    %791 = vmatpush1.bf16.msra.mxu0 0
    %792 = vmatprep.subr.bf16.mxu0 0
    %793 = vmatpush1.bf16.msra.mxu0 0
    %794 = vmatprep.subr.bf16.mxu0 0
    %795 = vmatpush1.bf16.msra.mxu0 0
    %796 = vmatprep.subr.bf16.mxu0 0
    %797 = vmatpush1.bf16.msra.mxu0 0
    %798 = vmatprep.subr.bf16.mxu0 0
    %799 = vmatpush1.bf16.msra.mxu0 0
    %800 = vmatprep.subr.bf16.mxu0 0
    %801 = vmatpush1.bf16.msra.mxu0 0
    %802 = vmatprep.mubr.bf16.mxu0 0
    %803 = vmatmul.mubr.bf16.gmra.mrb[0].mxu0 %v765
    %v804 = vpop.f32.mrb[0].mxu0
    %v805 = vadd.f32 0.0, %v804
    %v806 = vpop.f32.mrb[0].mxu0
    %v807 = vpop.f32.mrb[0].mxu0
    %v808 = vpop.f32.mrb[0].mxu0
    %809 = vdwg.mxu0
    %810 = vrot.lane.b32.xlu0 %v144, 104
    %v811 = vpop.permute.xlu0 %810
    %812 = vrot.lane.b32.xlu0 %v150, 72
    %v813 = vpop.permute.xlu0 %812
    %v815 = vsel %vm153, %v811, 0
    %v818 = vsel %vm153, %v813, 0
    %820 = vmatprep.subr.bf16.mxu0 0
    %821 = vmatpush1.bf16.xpose.msra.mxu0 %v818
    %822 = vmatprep.subr.bf16.mxu0 0
    %823 = vmatpush1.bf16.xpose.msra.mxu0 0
    %824 = vmatprep.subr.bf16.mxu0 0
    %825 = vmatpush1.bf16.xpose.msra.mxu0 0
    %826 = vmatprep.subr.bf16.mxu0 0
    %827 = vmatpush1.bf16.xpose.msra.mxu0 0
    %828 = vmatprep.subr.bf16.mxu0 0
    %829 = vmatpush1.bf16.xpose.msra.mxu0 0
    %830 = vmatprep.subr.bf16.mxu0 0
    %831 = vmatpush1.bf16.xpose.msra.mxu0 0
    %832 = vmatprep.subr.bf16.mxu0 0
    %833 = vmatpush1.bf16.xpose.msra.mxu0 0
    %834 = vmatprep.subr.bf16.mxu0 0
    %835 = vmatpush1.bf16.xpose.msra.mxu0 0
    %836 = vmatprep.subr.bf16.mxu0 0
    %837 = vmatpush1.bf16.xpose.msra.mxu0 0
    %838 = vmatprep.subr.bf16.mxu0 0
    %839 = vmatpush1.bf16.xpose.msra.mxu0 0
    %840 = vmatprep.subr.bf16.mxu0 0
    %841 = vmatpush1.bf16.xpose.msra.mxu0 0
    %842 = vmatprep.subr.bf16.mxu0 0
    %843 = vmatpush1.bf16.xpose.msra.mxu0 0
    %844 = vmatprep.subr.bf16.mxu0 0
    %845 = vmatpush1.bf16.xpose.msra.mxu0 0
    %846 = vmatprep.subr.bf16.mxu0 0
    %847 = vmatpush1.bf16.xpose.msra.mxu0 0
    %848 = vmatprep.subr.bf16.mxu0 0
    %849 = vmatpush1.bf16.xpose.msra.mxu0 0
    %850 = vmatprep.subr.bf16.mxu0 0
    %851 = vmatpush1.bf16.xpose.msra.mxu0 0
    %852 = vmatprep.mubr.bf16.mxu0 0
    %853 = vmatmul.mubr.bf16.gmra.mrb[0].mxu0 %v815
    %v854 = vpop.f32.mrb[0].mxu0
    %v855 = vadd.f32 0.0, %v854
    %v856 = vpop.f32.mrb[0].mxu0
    %v857 = vpop.f32.mrb[0].mxu0
    %v858 = vpop.f32.mrb[0].mxu0
    %859 = vdwg.mxu0
    %860 = vrot.lane.b32.xlu0 %v145, 104
    %v861 = vpop.permute.xlu0 %860
    %862 = vrot.lane.b32.xlu0 %v200, 72
    %v863 = vpop.permute.xlu0 %862
    %v865 = vsel %vm153, %v861, 0
    %v868 = vsel %vm153, %v863, 0
    %870 = vmatprep.subr.bf16.mxu0 0
    %871 = vmatpush1.bf16.xpose.msra.mxu0 %v868
    %872 = vmatprep.subr.bf16.mxu0 0
    %873 = vmatpush1.bf16.xpose.msra.mxu0 0
    %874 = vmatprep.subr.bf16.mxu0 0
    %875 = vmatpush1.bf16.xpose.msra.mxu0 0
    %876 = vmatprep.subr.bf16.mxu0 0
    %877 = vmatpush1.bf16.xpose.msra.mxu0 0
    %878 = vmatprep.subr.bf16.mxu0 0
    %879 = vmatpush1.bf16.xpose.msra.mxu0 0
    %880 = vmatprep.subr.bf16.mxu0 0
    %881 = vmatpush1.bf16.xpose.msra.mxu0 0
    %882 = vmatprep.subr.bf16.mxu0 0
    %883 = vmatpush1.bf16.xpose.msra.mxu0 0
    %884 = vmatprep.subr.bf16.mxu0 0
    %885 = vmatpush1.bf16.xpose.msra.mxu0 0
    %886 = vmatprep.subr.bf16.mxu0 0
    %887 = vmatpush1.bf16.xpose.msra.mxu0 0
    %888 = vmatprep.subr.bf16.mxu0 0
    %889 = vmatpush1.bf16.xpose.msra.mxu0 0
    %890 = vmatprep.subr.bf16.mxu0 0
    %891 = vmatpush1.bf16.xpose.msra.mxu0 0
    %892 = vmatprep.subr.bf16.mxu0 0
    %893 = vmatpush1.bf16.xpose.msra.mxu0 0
    %894 = vmatprep.subr.bf16.mxu0 0
    %895 = vmatpush1.bf16.xpose.msra.mxu0 0
    %896 = vmatprep.subr.bf16.mxu0 0
    %897 = vmatpush1.bf16.xpose.msra.mxu0 0
    %898 = vmatprep.subr.bf16.mxu0 0
    %899 = vmatpush1.bf16.xpose.msra.mxu0 0
    %900 = vmatprep.subr.bf16.mxu0 0
    %901 = vmatpush1.bf16.xpose.msra.mxu0 0
    %902 = vmatprep.mubr.bf16.mxu0 0
    %903 = vmatmul.mubr.bf16.gmra.mrb[0].mxu0 %v865
    %v904 = vpop.f32.mrb[0].mxu0
    %v905 = vadd.f32 0.0, %v904
    %v906 = vpop.f32.mrb[0].mxu0
    %v907 = vpop.f32.mrb[0].mxu0
    %v908 = vpop.f32.mrb[0].mxu0
    %909 = vdwg.mxu0
    %v910 = vsel %vm153, %v855, -inf
    %911 = vmax.xlane.f32.xlu0 %v910
    %v912 = vpop.xlane.xlu0 %911
    %v913 = vsel %vm153, %v905, -inf
    %914 = vmax.xlane.f32.xlu0 %v913
    %v915 = vpop.xlane.xlu0 %914
    %v916 = vsub.f32 %v855, %v912
    %v917 = vsub.f32 %v905, %v915
    %v918 = vmul.f32 %v916, 1.442695
    %v919 = vpow.pop %v918
    %v920 = vmul.f32 %v917, 1.442695
    %v921 = vpow.pop %v920
    %v922 = vsel %vm153, %v919, 0.0
    %923 = vadd.xlane.f32.xlu0 %v922
    %v924 = vpop.xlane.xlu0 %923
    %v925 = vsel %vm153, %v921, 0.0
    %926 = vadd.xlane.f32.xlu0 %v925
    %v927 = vpop.xlane.xlu0 %926
    %v928 = vrcp.pop %v924
    %v929 = vrcp.pop %v927
    %v930 = vmul.f32 %v919, %v928
    %v931 = vmul.f32 %v921, %v929
    %v932 = vpack.c.bf16 %v930, %v930
    %v933 = vpack.c.bf16 %v931, %v931
    %934 = vrot.lane.b32.xlu0 %v150, 40
    %v935 = vpop.permute.xlu0 %934
    %v937 = vsel %vm153, %v932, 0
    %v940 = vsel %vm278, %v935, 0
    %942 = vmatprep.subr.bf16.mxu0 0
    %943 = vmatpush1.bf16.msra.mxu0 %v940
    %944 = vmatprep.subr.bf16.mxu0 0
    %945 = vmatpush1.bf16.msra.mxu0 0
    %946 = vmatprep.subr.bf16.mxu0 0
    %947 = vmatpush1.bf16.msra.mxu0 0
    %948 = vmatprep.subr.bf16.mxu0 0
    %949 = vmatpush1.bf16.msra.mxu0 0
    %950 = vmatprep.subr.bf16.mxu0 0
    %951 = vmatpush1.bf16.msra.mxu0 0
    %952 = vmatprep.subr.bf16.mxu0 0
    %953 = vmatpush1.bf16.msra.mxu0 0
    %954 = vmatprep.subr.bf16.mxu0 0
    %955 = vmatpush1.bf16.msra.mxu0 0
    %956 = vmatprep.subr.bf16.mxu0 0
    %957 = vmatpush1.bf16.msra.mxu0 0
    %958 = vmatprep.subr.bf16.mxu0 0
    %959 = vmatpush1.bf16.msra.mxu0 0
    %960 = vmatprep.subr.bf16.mxu0 0
    %961 = vmatpush1.bf16.msra.mxu0 0
    %962 = vmatprep.subr.bf16.mxu0 0
    %963 = vmatpush1.bf16.msra.mxu0 0
    %964 = vmatprep.subr.bf16.mxu0 0
    %965 = vmatpush1.bf16.msra.mxu0 0
    %966 = vmatprep.subr.bf16.mxu0 0
    %967 = vmatpush1.bf16.msra.mxu0 0
    %968 = vmatprep.subr.bf16.mxu0 0
    %969 = vmatpush1.bf16.msra.mxu0 0
    %970 = vmatprep.subr.bf16.mxu0 0
    %971 = vmatpush1.bf16.msra.mxu0 0
    %972 = vmatprep.subr.bf16.mxu0 0
    %973 = vmatpush1.bf16.msra.mxu0 0
    %974 = vmatprep.mubr.bf16.mxu0 0
    %975 = vmatmul.mubr.bf16.gmra.mrb[0].mxu0 %v937
    %v976 = vpop.f32.mrb[0].mxu0
    %v977 = vadd.f32 0.0, %v976
    %v978 = vpop.f32.mrb[0].mxu0
    %v979 = vpop.f32.mrb[0].mxu0
    %v980 = vpop.f32.mrb[0].mxu0
    %981 = vdwg.mxu0
    %982 = vrot.lane.b32.xlu0 %v200, 40
    %v983 = vpop.permute.xlu0 %982
    %v985 = vsel %vm153, %v933, 0
    %v988 = vsel %vm278, %v983, 0
    %990 = vmatprep.subr.bf16.mxu0 0
    %991 = vmatpush1.bf16.msra.mxu0 %v988
    %992 = vmatprep.subr.bf16.mxu0 0
    %993 = vmatpush1.bf16.msra.mxu0 0
    %994 = vmatprep.subr.bf16.mxu0 0
    %995 = vmatpush1.bf16.msra.mxu0 0
    %996 = vmatprep.subr.bf16.mxu0 0
    %997 = vmatpush1.bf16.msra.mxu0 0
    %998 = vmatprep.subr.bf16.mxu0 0
    %999 = vmatpush1.bf16.msra.mxu0 0
    %1000 = vmatprep.subr.bf16.mxu0 0
    %1001 = vmatpush1.bf16.msra.mxu0 0
    %1002 = vmatprep.subr.bf16.mxu0 0
    %1003 = vmatpush1.bf16.msra.mxu0 0
    %1004 = vmatprep.subr.bf16.mxu0 0
    %1005 = vmatpush1.bf16.msra.mxu0 0
    %1006 = vmatprep.subr.bf16.mxu0 0
    %1007 = vmatpush1.bf16.msra.mxu0 0
    %1008 = vmatprep.subr.bf16.mxu0 0
    %1009 = vmatpush1.bf16.msra.mxu0 0
    %1010 = vmatprep.subr.bf16.mxu0 0
    %1011 = vmatpush1.bf16.msra.mxu0 0
    %1012 = vmatprep.subr.bf16.mxu0 0
    %1013 = vmatpush1.bf16.msra.mxu0 0
    %1014 = vmatprep.subr.bf16.mxu0 0
    %1015 = vmatpush1.bf16.msra.mxu0 0
    %1016 = vmatprep.subr.bf16.mxu0 0
    %1017 = vmatpush1.bf16.msra.mxu0 0
    %1018 = vmatprep.subr.bf16.mxu0 0
    %1019 = vmatpush1.bf16.msra.mxu0 0
    %1020 = vmatprep.subr.bf16.mxu0 0
    %1021 = vmatpush1.bf16.msra.mxu0 0
    %1022 = vmatprep.mubr.bf16.mxu0 0
    %1023 = vmatmul.mubr.bf16.gmra.mrb[0].mxu0 %v985
    %v1024 = vpop.f32.mrb[0].mxu0
    %v1025 = vadd.f32 0.0, %v1024
    %v1026 = vpop.f32.mrb[0].mxu0
    %v1027 = vpop.f32.mrb[0].mxu0
    %v1028 = vpop.f32.mrb[0].mxu0
    %1029 = vdwg.mxu0
    %1032 = vrot.lane.b32.xlu0 %v537, 8
    %v1033 = vpop.permute.xlu0 %1032
    %1034 = vrot.lane.b32.xlu0 %v585, 8
    %v1035 = vpop.permute.xlu0 %1034
    %1040 = vrot.lane.b32.xlu0 %v757, 16
    %v1041 = vpop.permute.xlu0 %1040
    %1042 = vrot.lane.b32.xlu0 %v805, 16
    %v1043 = vpop.permute.xlu0 %1042
    %1048 = vrot.lane.b32.xlu0 %v977, 24
    %v1049 = vpop.permute.xlu0 %1048
    %1050 = vrot.lane.b32.xlu0 %v1025, 24
    %v1051 = vpop.permute.xlu0 %1050
    %v1054 = vsel %vm153, %v317, %v1033
    %v1055 = vsel %vm153, %v365, %v1035
    %vm1056 = vcmask 130048
    %v1057 = vsel %vm1056, %v1054, %v1041
    %v1058 = vsel %vm1056, %v1055, %v1043
    %vm1059 = vcmask 195584
    %v1060 = vsel %vm1059, %v1057, %v1049
    %v1061 = vsel %vm1059, %v1058, %v1051
    %v1062 = vpack.c.bf16 %v1061, %v1060
    %v1063 = vld [vmem:[#allocation7] sm:$0xf]
    %v1064 = vld [vmem:[#allocation7 + $0x4] sm:$0xf]
    %v1065 = vld [vmem:[#allocation7 + $0x8] sm:$0xf]
    %v1066 = vld [vmem:[#allocation7 + $0xc] sm:$0xf]
    %v1067 = vld [vmem:[%s4] sm:$0x1]
    %v1069 = vlaneseq
    %v1070 = vshrl.u32 %v1069, 7
    %v1071 = vsub.s32 0, %v1070
    %v1072 = vrot.slane %v1067, %v1071
    %v1078 = vunpack.c.l.b16 %v1063
    %v1079 = vunpack.c.l.b16 %v1064
    %v1080 = vunpack.c.l.b16 %v1065
    %v1081 = vunpack.c.l.b16 %v1066
    %v1082 = vpack.c.b16 %v1079, %v1078
    %v1083 = vpack.c.b16 %v1081, %v1080
    %v1087 = vsel %vm93, %v1062, 0
    %1089 = vmatprep.subr.bf16.mxu0 0
    %1090 = vmatpush1.bf16.msra.mxu0 %v1082
    %1091 = vmatprep.subr.bf16.mxu0 0
    %1092 = vmatpush1.bf16.msra.mxu0 %v1083
    %1093 = vmatprep.subr.bf16.mxu0 0
    %1094 = vmatpush1.bf16.msra.mxu0 0
    %1095 = vmatprep.subr.bf16.mxu0 0
    %1096 = vmatpush1.bf16.msra.mxu0 0
    %1097 = vmatprep.subr.bf16.mxu0 0
    %1098 = vmatpush1.bf16.msra.mxu0 0
    %1099 = vmatprep.subr.bf16.mxu0 0
    %1100 = vmatpush1.bf16.msra.mxu0 0
    %1101 = vmatprep.subr.bf16.mxu0 0
    %1102 = vmatpush1.bf16.msra.mxu0 0
    %1103 = vmatprep.subr.bf16.mxu0 0
    %1104 = vmatpush1.bf16.msra.mxu0 0
    %1105 = vmatprep.subr.bf16.mxu0 0
    %1106 = vmatpush1.bf16.msra.mxu0 0
    %1107 = vmatprep.subr.bf16.mxu0 0
    %1108 = vmatpush1.bf16.msra.mxu0 0
    %1109 = vmatprep.subr.bf16.mxu0 0
    %1110 = vmatpush1.bf16.msra.mxu0 0
    %1111 = vmatprep.subr.bf16.mxu0 0
    %1112 = vmatpush1.bf16.msra.mxu0 0
    %1113 = vmatprep.subr.bf16.mxu0 0
    %1114 = vmatpush1.bf16.msra.mxu0 0
    %1115 = vmatprep.subr.bf16.mxu0 0
    %1116 = vmatpush1.bf16.msra.mxu0 0
    %1117 = vmatprep.subr.bf16.mxu0 0
    %1118 = vmatpush1.bf16.msra.mxu0 0
    %1119 = vmatprep.subr.bf16.mxu0 0
    %1120 = vmatpush1.bf16.msra.mxu0 0
    %1121 = vmatprep.mubr.bf16.mxu0 0
    %1122 = vmatmul.mubr.bf16.gmra.mrb[0].mxu0 %v1087
    %v1123 = vpop.f32.mrb[0].mxu0
    %v1124 = vadd.f32 %v1072, %v1123
    %v1125 = vpop.f32.mrb[0].mxu0
    %v1126 = vpop.f32.mrb[0].mxu0
    %v1127 = vadd.f32 %v1072, %v1126
    %v1128 = vpop.f32.mrb[0].mxu0
    %1129 = vdwg.mxu0
    %1132 = vrot.lane.b32.xlu0 %v132, 32
    %v1133 = vpop.permute.xlu0 %1132
    %1134 = vrot.lane.b32.xlu0 %v135, 32
    %v1135 = vpop.permute.xlu0 %1134
    %v1138 = vsel %vm93, %v1124, %v1133
    %v1139 = vsel %vm93, %v1127, %v1135
    %1140 = vst [vmem:[#allocation8] sm:$0xff] %v1138
    %1141 = vst [vmem:[#allocation8 + $0x8] sm:$0xff] %v1139
    // Predicated region
    $region34: #{tpu_custom_call.1} parent=1 // pred_check
      _
    $region35: #{tpu_custom_call.1} parent=1 // pred_check_branch
      %1143 = sbr.rel (0) target = $region37
    $region36: #{tpu_custom_call.1} parent=1 // pred_region
      %s1145 = ssub.s32 256, 256
      %1146 = vsyncadd [#allocation4], %s1145
      %s1147 = sshll.u32 [#allocation8], 4
      %s1148 = int_to_ptr.vmem [resolvable:$true] %s1147
      %1153 = dma.vmem_to_hbm [thread:$0]  %s1148, 256, %s5, [#allocation4], 128, 128, 8
    $region37: #{tpu_custom_call.1} parent=1 // pred_fallthru
      _
    // Predicated region
    $region38: #{tpu_custom_call.1} parent=1 // pred_check
      _
    $region39: #{tpu_custom_call.1} parent=1 // pred_check_branch
      %1155 = sbr.rel (0) target = $region41
    $region40: #{tpu_custom_call.1} parent=1 // pred_region
      %1156 = dma.done [#allocation4], 256
    $region41: #{tpu_custom_call.1} parent=1 // pred_fallthru
      _
    %1157 = vsyncpa [#allocation3], 1
    %1158 = vsyncpa [#allocation6], 1
    %1159 = vsyncpa [#allocation4], 1

</llo_original>
